<compile_context>
chip_gen: v7x
topology: tpu7x:2x2x1
jax: 0.10.0
libtpu: 0.0.40
codegen_flags: <defaults>
</compile_context>

<pallas_src>
import jax
import jax.numpy as jnp
from jax.experimental import pallas as pl
from jax.experimental.pallas import tpu as pltpu


def _scorer_kernel(x_ref, w1_ref, b1_ref, w2_ref, b2_ref, w3_ref, b3_ref, o_ref):
    """fc1+ReLU -> fc2+ReLU -> fc3(VPU)+sigmoid, per-row scores for one batch tile."""
    tb, T, F = x_ref.shape
    rows = tb * T

    # (tb, T, F) -> (tb*T, F): leading-dim merge only (lane/sublane layout kept).
    x = x_ref[...].reshape(rows, F)                                   # bf16 (or f32)

    # fc1: bf16 MXU matmul, f32 accumulation.
    h1 = jnp.dot(x, w1_ref[...], preferred_element_type=jnp.float32)
    h1 = jnp.maximum(h1 + b1_ref[...], 0.0)                           # ReLU, f32
    # TODO(synk): nn.Dropout(p=0.6) is identity here (eval/inference semantics);
    # training-mode stochastic masking is not implemented.

    # fc2: cast activations back to the weight dtype for native-rate MXU.
    h2 = jnp.dot(h1.astype(w2_ref.dtype), w2_ref[...],
                 preferred_element_type=jnp.float32)
    h2 = jnp.maximum(h2 + b2_ref[...], 0.0)                           # ReLU, f32

    # fc3 (out_dim == 1): VPU multiply + lane reduction instead of an N=1 matmul.
    logits = jnp.sum(h2 * w3_ref[...], axis=-1, keepdims=True) + b3_ref[0]
    s = jax.nn.sigmoid(logits)                                        # (rows, 1) f32

    # Per-row scores; (rows,1) -> (tb, T, 1) is a leading-dim split (layout no-op).
    # The temporal mean happens in the wrapper (keeps this grid axis "parallel").
    o_ref[...] = s.reshape(tb, T, 1).astype(o_ref.dtype)


def _pick_batch_tile(B, T, target_rows=256):
    """Largest divisor tb of B with tb*T <= target_rows, keeping >=2 grid steps."""
    best = 1
    for d in range(1, B + 1):
        if B % d == 0 and d * T <= target_rows and (B // d >= 2 or B < 2):
            best = d
    return best


def scorer_c2fpl_pallas(x, w1, b1, w2, b2, w3, b3, *, use_bf16=True):
    """x: (B, T, F); weights in PyTorch nn.Linear convention (out_dim, in_dim)."""
    B, T, F = x.shape
    H1 = w1.shape[0]            # 512
    H2 = w2.shape[0]            # 32

    tb = _pick_batch_tile(B, T)
    grid = (B // tb,)

    # bf16 inputs for the MXU, f32 accumulation inside the kernel.
    cdt = jnp.bfloat16 if use_bf16 else x.dtype
    xk = x.astype(cdt)
    w1t = jnp.transpose(w1).astype(cdt)               # (F, H1) — no in-kernel .T
    w2t = jnp.transpose(w2).astype(cdt)               # (H1, H2)
    w3r = w3.reshape(1, H2).astype(jnp.float32)       # (1, H2) row for VPU fc3
    b1r = b1.reshape(1, H1).astype(jnp.float32)
    b2r = b2.reshape(1, H2).astype(jnp.float32)
    b3r = b3.reshape(1).astype(jnp.float32)           # SMEM scalar

    flops = 2 * B * T * (F * H1 + H1 * H2 + H2)
    bytes_in = (xk.size * xk.dtype.itemsize
                + w1t.size * w1t.dtype.itemsize
                + w2t.size * w2t.dtype.itemsize
                + (w3r.size + b1r.size + b2r.size + b3r.size) * 4)
    bytes_out = B * T * 4
    cost = pl.CostEstimate(flops=int(flops), transcendentals=int(B * T),
                           bytes_accessed=int(bytes_in + bytes_out))

    # Per-step VMEM: x tile (tb*T*F bf16, double-buffered) + resident weights
    # (F*H1 + H1*H2 bf16) + h1/h2 activations (tb*T*(H1+H2) f32) — tiny vs the
    # 16 MiB default scoped limit on v5e, so no vmem_limit_bytes override needed.
    scores = pl.pallas_call(
        _scorer_kernel,
        out_shape=jax.ShapeDtypeStruct((B, T, 1), jnp.float32),
        grid_spec=pltpu.PrefetchScalarGridSpec(
            num_scalar_prefetch=0,
            grid=grid,
            in_specs=[
                pl.BlockSpec((tb, T, F), lambda i: (i, 0, 0)),     # x batch tile
                pl.BlockSpec((F, H1), lambda i: (0, 0)),           # W1^T (resident)
                pl.BlockSpec((1, H1), lambda i: (0, 0)),           # b1
                pl.BlockSpec((H1, H2), lambda i: (0, 0)),          # W2^T (resident)
                pl.BlockSpec((1, H2), lambda i: (0, 0)),           # b2
                pl.BlockSpec((1, H2), lambda i: (0, 0)),           # w3 row
                pl.BlockSpec(memory_space=pltpu.MemorySpace.SMEM), # b3 scalar
            ],
            out_specs=pl.BlockSpec((tb, T, 1), lambda i: (i, 0, 0)),
        ),
        compiler_params=pltpu.CompilerParams(
            dimension_semantics=("parallel",)),        # shard tiles across TCs (v7x)
        cost_estimate=cost,
    )(xk, w1t, b1r, w2t, b2r, w3r, b3r)

    # Temporal mean over T (dim=1) in the wrapper — cheap, keeps the kernel's
    # grid axis parallel and removes the old (B, B*T) averaging-matrix input.
    return jnp.mean(scores, axis=1).astype(x.dtype)    # (B, 1)


def scorer_c2fpl_ref(x, w1, b1, w2, b2, w3, b3):
    """Pure-JAX f32 reference mirroring the PyTorch forward (eval mode)."""
    hp = jax.lax.Precision.HIGHEST
    h1 = jax.nn.relu(jnp.einsum('btf,hf->bth', x, w1, precision=hp) + b1)
    h2 = jax.nn.relu(jnp.einsum('bth,oh->bto', h1, w2, precision=hp) + b2)
    s = jax.nn.sigmoid(jnp.einsum('bto,po->btp', h2, w3, precision=hp) + b3)
    return jnp.mean(s, axis=1)                                      # (B, 1)


if __name__ == "__main__":
    # Small shapes consistent with the module (hidden dims 512/32/1 are fixed).
    B, T, F = 2, 16, 128
    H1, H2 = 512, 32

    key = jax.random.PRNGKey(0)
    kx, k1, k2, k3 = jax.random.split(key, 4)

    def xavier_uniform(k, out_dim, in_dim):
        bound = (6.0 / (in_dim + out_dim)) ** 0.5
        return jax.random.uniform(k, (out_dim, in_dim), minval=-bound,
                                  maxval=bound, dtype=jnp.float32)

    x = jax.random.normal(kx, (B, T, F), dtype=jnp.float32)
    w1 = xavier_uniform(k1, H1, F)
    b1 = jnp.zeros((H1,), jnp.float32)       # weights_init zero-fills biases
    w2 = xavier_uniform(k2, H2, H1)
    b2 = jnp.zeros((H2,), jnp.float32)
    w3 = xavier_uniform(k3, 1, H2)
    b3 = jnp.zeros((1,), jnp.float32)

    y_ref = scorer_c2fpl_ref(x, w1, b1, w2, b2, w3, b3)

    # f32 path: tight check against the module-faithful reference.
    y32 = scorer_c2fpl_pallas(x, w1, b1, w2, b2, w3, b3, use_bf16=False)
    jax.block_until_ready(y32)
    assert y32.shape == (B, 1)
    assert jnp.allclose(y32, y_ref, atol=1e-3, rtol=1e-3), "f32 mismatch vs reference"

    # bf16 fast path (default): loose tolerance accounts for bf16 input quantization.
    y = scorer_c2fpl_pallas(x, w1, b1, w2, b2, w3, b3)
    jax.block_until_ready(y)
    assert y.shape == (B, 1)
    assert jnp.allclose(y, y_ref, atol=2e-2, rtol=2e-2), "bf16 mismatch vs reference"

    print("KERNEL_OK")
</pallas_src>

<mosaic_0001>
module attributes {stable_mosaic.version = 11 : i64} {
  func.func @_scorer_kernel(%arg0: i32, %arg1: memref<1x16x128xf32, #tpu.memory_space<vmem>>, %arg2: memref<128x512xf32, #tpu.memory_space<vmem>>, %arg3: memref<1x512xf32, #tpu.memory_space<vmem>>, %arg4: memref<512x32xf32, #tpu.memory_space<vmem>>, %arg5: memref<1x32xf32, #tpu.memory_space<vmem>>, %arg6: memref<1x32xf32, #tpu.memory_space<vmem>>, %arg7: memref<1xf32, #tpu.memory_space<smem>>, %arg8: memref<1x16x1xf32, #tpu.memory_space<vmem>>) attributes {dimension_semantics = [#tpu.dimension_semantics<parallel>], iteration_bounds = array<i64: 2>, scalar_prefetch = 0 : i64, scratch_operands = 0 : i64, tpu.core_type = #tpu.core_type<tc>, window_params = [{transform_indices = @transform_0, window_bounds = array<i64: 1, 16, 128>}, {pipeline_mode = #tpu.pipeline_mode<synchronous>, transform_indices = @transform_1, window_bounds = array<i64: 128, 512>}, {pipeline_mode = #tpu.pipeline_mode<synchronous>, transform_indices = @transform_2, window_bounds = array<i64: 1, 512>}, {pipeline_mode = #tpu.pipeline_mode<synchronous>, transform_indices = @transform_3, window_bounds = array<i64: 512, 32>}, {pipeline_mode = #tpu.pipeline_mode<synchronous>, transform_indices = @transform_4, window_bounds = array<i64: 1, 32>}, {pipeline_mode = #tpu.pipeline_mode<synchronous>, transform_indices = @transform_5, window_bounds = array<i64: 1, 32>}, {transform_indices = @transform_6, window_bounds = array<i64: 1>}, {transform_indices = @transform_7, window_bounds = array<i64: 1, 16, 1>}]} {
    %c0 = arith.constant 0 : index
    %c0_0 = arith.constant 0 : index
    %c0_1 = arith.constant 0 : index
    %0 = vector.load %arg1[%c0, %c0_0, %c0_1] : memref<1x16x128xf32, #tpu.memory_space<vmem>>, vector<1x16x128xf32>
    %1 = vector.shape_cast %0 : vector<1x16x128xf32> to vector<16x128xf32>
    %c0_2 = arith.constant 0 : index
    %c0_3 = arith.constant 0 : index
    %2 = vector.load %arg2[%c0_2, %c0_3] : memref<128x512xf32, #tpu.memory_space<vmem>>, vector<128x512xf32>
    %cst = arith.constant dense<0.000000e+00> : vector<16x512xf32>
    %3 = tpu.matmul %1, %2, %cst {dimension_numbers = #tpu.dot_dimension_numbers<[1], [0], [0], [1], [0, 0, 1, 1], [], []>} : vector<16x128xf32>, vector<128x512xf32>, vector<16x512xf32> -> vector<16x512xf32>
    %c0_4 = arith.constant 0 : index
    %c0_5 = arith.constant 0 : index
    %4 = vector.load %arg3[%c0_4, %c0_5] : memref<1x512xf32, #tpu.memory_space<vmem>>, vector<1x512xf32>
    %5 = vector.broadcast %4 : vector<1x512xf32> to vector<16x512xf32>
    %6 = arith.addf %3, %5 : vector<16x512xf32>
    %cst_6 = arith.constant 0.000000e+00 : f32
    %7 = vector.broadcast %cst_6 : f32 to vector<16x512xf32>
    %8 = arith.maximumf %6, %7 : vector<16x512xf32>
    %c0_7 = arith.constant 0 : index
    %c0_8 = arith.constant 0 : index
    %9 = vector.load %arg4[%c0_7, %c0_8] : memref<512x32xf32, #tpu.memory_space<vmem>>, vector<512x32xf32>
    %cst_9 = arith.constant dense<0.000000e+00> : vector<16x32xf32>
    %10 = tpu.matmul %8, %9, %cst_9 {dimension_numbers = #tpu.dot_dimension_numbers<[1], [0], [0], [1], [0, 0, 1, 1], [], []>} : vector<16x512xf32>, vector<512x32xf32>, vector<16x32xf32> -> vector<16x32xf32>
    %c0_10 = arith.constant 0 : index
    %c0_11 = arith.constant 0 : index
    %11 = vector.load %arg5[%c0_10, %c0_11] : memref<1x32xf32, #tpu.memory_space<vmem>>, vector<1x32xf32>
    %12 = vector.broadcast %11 : vector<1x32xf32> to vector<16x32xf32>
    %13 = arith.addf %10, %12 : vector<16x32xf32>
    %cst_12 = arith.constant 0.000000e+00 : f32
    %14 = vector.broadcast %cst_12 : f32 to vector<16x32xf32>
    %15 = arith.maximumf %13, %14 : vector<16x32xf32>
    %c0_13 = arith.constant 0 : index
    %c0_14 = arith.constant 0 : index
    %16 = vector.load %arg6[%c0_13, %c0_14] : memref<1x32xf32, #tpu.memory_space<vmem>>, vector<1x32xf32>
    %17 = vector.broadcast %16 : vector<1x32xf32> to vector<16x32xf32>
    %18 = arith.mulf %15, %17 : vector<16x32xf32>
    %cst_15 = arith.constant dense<0.000000e+00> : vector<16xf32>
    %19 = vector.multi_reduction <add>, %18, %cst_15 [1] : vector<16x32xf32> to vector<16xf32>
    %20 = vector.shape_cast %19 : vector<16xf32> to vector<16x1xf32>
    %c0_16 = arith.constant 0 : index
    %21 = memref.load %arg7[%c0_16] : memref<1xf32, #tpu.memory_space<smem>>
    %22 = vector.broadcast %21 : f32 to vector<16x1xf32>
    %23 = arith.addf %20, %22 : vector<16x1xf32>
    %24 = arith.negf %23 : vector<16x1xf32>
    %25 = math.exp %24 : vector<16x1xf32>
    %cst_17 = arith.constant 1.000000e+00 : f32
    %26 = vector.broadcast %cst_17 : f32 to vector<16x1xf32>
    %27 = arith.addf %26, %25 : vector<16x1xf32>
    %28 = arith.divf %26, %27 : vector<16x1xf32>
    %29 = vector.shape_cast %28 : vector<16x1xf32> to vector<1x16x1xf32>
    %c0_18 = arith.constant 0 : index
    %c0_19 = arith.constant 0 : index
    %c0_20 = arith.constant 0 : index
    %30 = vector.load %arg8[%c0_18, %c0_19, %c0_20] : memref<1x16x1xf32, #tpu.memory_space<vmem>>, vector<1x16x1xf32>
    tpu.vector_store %arg8[%c0_18, %c0_19, %c0_20], %29 {strides = array<i32>} : memref<1x16x1xf32, #tpu.memory_space<vmem>>, vector<1x16x1xf32>,
    return
  }
  func.func @transform_0(%arg0: i32) -> (i32, i32, i32) {
    %c0_i32 = arith.constant 0 : i32
    %c0_i32_0 = arith.constant 0 : i32
    %c0_i32_1 = arith.constant 0 : i32
    return %arg0, %c0_i32, %c0_i32_0 : i32, i32, i32
  }
  func.func @transform_1(%arg0: i32) -> (i32, i32) {
    %c0_i32 = arith.constant 0 : i32
    %c0_i32_0 = arith.constant 0 : i32
    %c0_i32_1 = arith.constant 0 : i32
    return %c0_i32, %c0_i32_0 : i32, i32
  }
  func.func @transform_2(%arg0: i32) -> (i32, i32) {
    %c0_i32 = arith.constant 0 : i32
    %c0_i32_0 = arith.constant 0 : i32
    %c0_i32_1 = arith.constant 0 : i32
    return %c0_i32, %c0_i32_0 : i32, i32
  }
  func.func @transform_3(%arg0: i32) -> (i32, i32) {
    %c0_i32 = arith.constant 0 : i32
    %c0_i32_0 = arith.constant 0 : i32
    %c0_i32_1 = arith.constant 0 : i32
    return %c0_i32, %c0_i32_0 : i32, i32
  }
  func.func @transform_4(%arg0: i32) -> (i32, i32) {
    %c0_i32 = arith.constant 0 : i32
    %c0_i32_0 = arith.constant 0 : i32
    %c0_i32_1 = arith.constant 0 : i32
    return %c0_i32, %c0_i32_0 : i32, i32
  }
  func.func @transform_5(%arg0: i32) -> (i32, i32) {
    %c0_i32 = arith.constant 0 : i32
    %c0_i32_0 = arith.constant 0 : i32
    %c0_i32_1 = arith.constant 0 : i32
    return %c0_i32, %c0_i32_0 : i32, i32
  }
  func.func @transform_6(%arg0: i32) -> i32 {
    %c0_i32 = arith.constant 0 : i32
    %c0_i32_0 = arith.constant 0 : i32
    return %c0_i32 : i32
  }
  func.func @transform_7(%arg0: i32) -> (i32, i32, i32) {
    %c0_i32 = arith.constant 0 : i32
    %c0_i32_0 = arith.constant 0 : i32
    %c0_i32_1 = arith.constant 0 : i32
    return %arg0, %c0_i32, %c0_i32_0 : i32, i32, i32
  }
}

</mosaic_0001>

<llo_original>
// kernel: tpu_custom_call.1
$region0: #{tpu_custom_call.1}
  #allocation0 [shape = 'u32[]', space=smem, size = 0x4, offset = 0x4, fixed_abs, tag = 'smem constant byte address 0x4 - core index']
  #allocation1 [shape = 'u32[144,128]{1,0:T(1,128)}', space=vmem, size = 0x12000, scoped, tag = 'internal scratch']
  #allocation2 [shape = 'f32[1]{0:T(128)S(6)}', space=smem, size = 0x200, scoped, tag = 'scoped memory for tpu_custom_call.1']
  %s0 = inlined_call_operand.vmem [shape: f32[2,16,128], index: 0, kind: input, shape index: {}]
  %s1 = inlined_call_operand.vmem [shape: f32[128,512], index: 1, kind: input, shape index: {}]
  %s2 = inlined_call_operand.vmem [shape: f32[1,512], index: 2, kind: input, shape index: {}]
  %s3 = inlined_call_operand.vmem [shape: f32[512,32], index: 3, kind: input, shape index: {}]
  %s4 = inlined_call_operand.vmem [shape: f32[1,32], index: 4, kind: input, shape index: {}]
  %s5 = inlined_call_operand.vmem [shape: f32[1,32], index: 5, kind: input, shape index: {}]
  %s6 = inlined_call_operand.<no memory space> [shape: f32[1], index: 6, kind: input, shape index: {}]
  %s7 = inlined_call_operand.vmem [shape: f32[2,16,1], index: 7, kind: output, shape index: {}]
  %s8 = sld [smem:[#allocation0]]
  $region61: #{tpu_custom_call.1} parent=0
    _
  %s10 = ssub.s32 1, %s8
  %s11 = scalar_select 0, %s10, %s8
  %12 = sst [smem:[#allocation2]] %s6
  loop: start=0, step=1, limit=4
  $region2: #{tpu_custom_call.1} parent=0 // loop_pre_header
    _
  $region3: #{tpu_custom_call.1} parent=0 // loop_header
    %s14 = sphi 0, %s18
    %p15 = scmp.ge.s32.totalorder %s14, 4
    %s24 = sphi 0, %s26
    %s27 = sphi 0, %s24
    %s28 = sphi 0, %s27
    %s44 = sphi 0, %s28
    %s48 = sphi 0, %s48
    %s50 = sphi 0, %s48
    %s51 = sphi 0, %s50
    %s65 = sphi 0, %s51
    %s69 = sphi 0, %s69
    %s71 = sphi 0, %s69
    %s72 = sphi 0, %s71
    %s86 = sphi 0, %s72
    %s90 = sphi 0, %s90
    %s92 = sphi 0, %s90
    %s93 = sphi 0, %s92
    %s107 = sphi 0, %s93
    %s111 = sphi 0, %s111
    %s113 = sphi 0, %s111
    %s114 = sphi 0, %s113
    %s128 = sphi 0, %s114
    %s132 = sphi 0, %s132
    %s134 = sphi 0, %s132
    %s135 = sphi 0, %s134
    %s149 = sphi 0, %s135
    %s153 = sphi 0, %s153
    %s155 = sphi 0, %s153
    %s156 = sphi 0, %s155
    %s170 = sphi 0, %s156
    %s176 = sphi 0, %s178
    %s179 = sphi 0, %s176
    %s180 = sphi 0, %s179
    %s196 = sphi 0, %s180
  $region4: #{tpu_custom_call.1} parent=0 // loop_header_branch
    %17 = sbr.rel (%p15) target = $region8
  $region5: #{tpu_custom_call.1} parent=0 // loop_body
    %s19 = ssub.s32 %s14, 1
    %s20 = ssub.s32 %s14, 2
    %s21 = sadd.s32 %s14, 1
    %s22 = ssub.s32 %s14, %s21
    %p23 = scmp.eq.s32.totalorder %s22, 0
    %s25 = sadd.s32 %s24, 1
    %s26 = scalar_select %p23, %s24, %s25
    %p29 = pneg %p23
    %p30 = scmp.eq.s32.totalorder %s14, 1
    %p31 = por %p29, %p30
    %p32 = scmp.ne.s32.totalorder %s24, %s27
    %p33 = scmp.eq.s32.totalorder %s14, 0
    %p34 = por %p32, %p33
    %p35 = scmp.ne.s32.totalorder %s24, %s27
    %p36 = scmp.eq.s32.totalorder %s19, 1
    %p37 = por %p35, %p36
    %p38 = scmp.ne.s32.totalorder %s27, %s28
    %p39 = scmp.eq.s32.totalorder %s19, 0
    %p40 = por %p38, %p39
    %p41 = scmp.ne.s32.totalorder %s27, %s28
    %p42 = scmp.eq.s32.totalorder %s20, 1
    %p43 = por %p41, %p42
    %p45 = scmp.ne.s32.totalorder %s28, %s44
    %p46 = scmp.eq.s32.totalorder %s20, 0
    %p47 = por %p45, %p46
    %s49 = sadd.s32 %s48, 1
    %p52 = scmp.eq.s32.totalorder %s14, 1
    %p53 = scmp.ne.s32.totalorder %s48, %s50
    %p54 = scmp.eq.s32.totalorder %s14, 0
    %p55 = por %p53, %p54
    %p56 = scmp.ne.s32.totalorder %s48, %s50
    %p57 = scmp.eq.s32.totalorder %s19, 1
    %p58 = por %p56, %p57
    %p59 = scmp.ne.s32.totalorder %s50, %s51
    %p60 = scmp.eq.s32.totalorder %s19, 0
    %p61 = por %p59, %p60
    %p62 = scmp.ne.s32.totalorder %s50, %s51
    %p63 = scmp.eq.s32.totalorder %s20, 1
    %p64 = por %p62, %p63
    %p66 = scmp.ne.s32.totalorder %s51, %s65
    %p67 = scmp.eq.s32.totalorder %s20, 0
    %p68 = por %p66, %p67
    %s70 = sadd.s32 %s69, 1
    %p73 = scmp.eq.s32.totalorder %s14, 1
    %p74 = scmp.ne.s32.totalorder %s69, %s71
    %p75 = scmp.eq.s32.totalorder %s14, 0
    %p76 = por %p74, %p75
    %p77 = scmp.ne.s32.totalorder %s69, %s71
    %p78 = scmp.eq.s32.totalorder %s19, 1
    %p79 = por %p77, %p78
    %p80 = scmp.ne.s32.totalorder %s71, %s72
    %p81 = scmp.eq.s32.totalorder %s19, 0
    %p82 = por %p80, %p81
    %p83 = scmp.ne.s32.totalorder %s71, %s72
    %p84 = scmp.eq.s32.totalorder %s20, 1
    %p85 = por %p83, %p84
    %p87 = scmp.ne.s32.totalorder %s72, %s86
    %p88 = scmp.eq.s32.totalorder %s20, 0
    %p89 = por %p87, %p88
    %s91 = sadd.s32 %s90, 1
    %p94 = scmp.eq.s32.totalorder %s14, 1
    %p95 = scmp.ne.s32.totalorder %s90, %s92
    %p96 = scmp.eq.s32.totalorder %s14, 0
    %p97 = por %p95, %p96
    %p98 = scmp.ne.s32.totalorder %s90, %s92
    %p99 = scmp.eq.s32.totalorder %s19, 1
    %p100 = por %p98, %p99
    %p101 = scmp.ne.s32.totalorder %s92, %s93
    %p102 = scmp.eq.s32.totalorder %s19, 0
    %p103 = por %p101, %p102
    %p104 = scmp.ne.s32.totalorder %s92, %s93
    %p105 = scmp.eq.s32.totalorder %s20, 1
    %p106 = por %p104, %p105
    %p108 = scmp.ne.s32.totalorder %s93, %s107
    %p109 = scmp.eq.s32.totalorder %s20, 0
    %p110 = por %p108, %p109
    %s112 = sadd.s32 %s111, 1
    %p115 = scmp.eq.s32.totalorder %s14, 1
    %p116 = scmp.ne.s32.totalorder %s111, %s113
    %p117 = scmp.eq.s32.totalorder %s14, 0
    %p118 = por %p116, %p117
    %p119 = scmp.ne.s32.totalorder %s111, %s113
    %p120 = scmp.eq.s32.totalorder %s19, 1
    %p121 = por %p119, %p120
    %p122 = scmp.ne.s32.totalorder %s113, %s114
    %p123 = scmp.eq.s32.totalorder %s19, 0
    %p124 = por %p122, %p123
    %p125 = scmp.ne.s32.totalorder %s113, %s114
    %p126 = scmp.eq.s32.totalorder %s20, 1
    %p127 = por %p125, %p126
    %p129 = scmp.ne.s32.totalorder %s114, %s128
    %p130 = scmp.eq.s32.totalorder %s20, 0
    %p131 = por %p129, %p130
    %s133 = sadd.s32 %s132, 1
    %p136 = scmp.eq.s32.totalorder %s14, 1
    %p137 = scmp.ne.s32.totalorder %s132, %s134
    %p138 = scmp.eq.s32.totalorder %s14, 0
    %p139 = por %p137, %p138
    %p140 = scmp.ne.s32.totalorder %s132, %s134
    %p141 = scmp.eq.s32.totalorder %s19, 1
    %p142 = por %p140, %p141
    %p143 = scmp.ne.s32.totalorder %s134, %s135
    %p144 = scmp.eq.s32.totalorder %s19, 0
    %p145 = por %p143, %p144
    %p146 = scmp.ne.s32.totalorder %s134, %s135
    %p147 = scmp.eq.s32.totalorder %s20, 1
    %p148 = por %p146, %p147
    %p150 = scmp.ne.s32.totalorder %s135, %s149
    %p151 = scmp.eq.s32.totalorder %s20, 0
    %p152 = por %p150, %p151
    %s154 = sadd.s32 %s153, 1
    %p157 = scmp.eq.s32.totalorder %s14, 1
    %p158 = scmp.ne.s32.totalorder %s153, %s155
    %p159 = scmp.eq.s32.totalorder %s14, 0
    %p160 = por %p158, %p159
    %p161 = scmp.ne.s32.totalorder %s153, %s155
    %p162 = scmp.eq.s32.totalorder %s19, 1
    %p163 = por %p161, %p162
    %p164 = scmp.ne.s32.totalorder %s155, %s156
    %p165 = scmp.eq.s32.totalorder %s19, 0
    %p166 = por %p164, %p165
    %p167 = scmp.ne.s32.totalorder %s155, %s156
    %p168 = scmp.eq.s32.totalorder %s20, 1
    %p169 = por %p167, %p168
    %p171 = scmp.ne.s32.totalorder %s156, %s170
    %p172 = scmp.eq.s32.totalorder %s20, 0
    %p173 = por %p171, %p172
    %s174 = ssub.s32 %s14, %s21
    %p175 = scmp.eq.s32.totalorder %s174, 0
    %s177 = sadd.s32 %s176, 1
    %s178 = scalar_select %p175, %s176, %s177
    %p181 = pneg %p175
    %p182 = scmp.eq.s32.totalorder %s14, 1
    %p183 = por %p181, %p182
    %p184 = scmp.ne.s32.totalorder %s176, %s179
    %p185 = scmp.eq.s32.totalorder %s14, 0
    %p186 = por %p184, %p185
    %p187 = scmp.ne.s32.totalorder %s176, %s179
    %p188 = scmp.eq.s32.totalorder %s19, 1
    %p189 = por %p187, %p188
    %p190 = scmp.ne.s32.totalorder %s179, %s180
    %p191 = scmp.eq.s32.totalorder %s19, 0
    %p192 = por %p190, %p191
    %p193 = scmp.ne.s32.totalorder %s179, %s180
    %p194 = scmp.eq.s32.totalorder %s20, 1
    %p195 = por %p193, %p194
    %p197 = scmp.ne.s32.totalorder %s180, %s196
    %p198 = scmp.eq.s32.totalorder %s20, 0
    %p199 = por %p197, %p198
    %p200 = scmp.le.s32.totalorder 1, %s14
    %p201 = scmp.lt.s32.totalorder %s14, 3
    %p202 = pnand %p200, %p201
    %p203 = pneg %p202
    // Predicated region
    $region9: #{tpu_custom_call.1} parent=5 // pred_check
      _
    $region10: #{tpu_custom_call.1} parent=5 // pred_check_branch
      %205 = sbr.rel (%p202) target = $region12
    $region11: #{tpu_custom_call.1} parent=5 // pred_region
      %s206 = ssub.s32 %s14, 1
      // Predicated region
      $region13: #{tpu_custom_call.1} parent=11 // pred_check
        %p207 = pneg %p61
      $region14: #{tpu_custom_call.1} parent=11 // pred_check_branch
        %209 = sbr.rel (%p207) target = $region16
      $region15: #{tpu_custom_call.1} parent=11 // pred_region
        _
      $region16: #{tpu_custom_call.1} parent=11 // pred_fallthru
        _
      // Predicated region
      $region17: #{tpu_custom_call.1} parent=11 // pred_check
        %p210 = pneg %p82
      $region18: #{tpu_custom_call.1} parent=11 // pred_check_branch
        %212 = sbr.rel (%p210) target = $region20
      $region19: #{tpu_custom_call.1} parent=11 // pred_region
        _
      $region20: #{tpu_custom_call.1} parent=11 // pred_fallthru
        _
      // Predicated region
      $region21: #{tpu_custom_call.1} parent=11 // pred_check
        %p213 = pneg %p103
      $region22: #{tpu_custom_call.1} parent=11 // pred_check_branch
        %215 = sbr.rel (%p213) target = $region24
      $region23: #{tpu_custom_call.1} parent=11 // pred_region
        _
      $region24: #{tpu_custom_call.1} parent=11 // pred_fallthru
        _
      // Predicated region
      $region25: #{tpu_custom_call.1} parent=11 // pred_check
        %p216 = pneg %p124
      $region26: #{tpu_custom_call.1} parent=11 // pred_check_branch
        %218 = sbr.rel (%p216) target = $region28
      $region27: #{tpu_custom_call.1} parent=11 // pred_region
        _
      $region28: #{tpu_custom_call.1} parent=11 // pred_fallthru
        _
      // Predicated region
      $region29: #{tpu_custom_call.1} parent=11 // pred_check
        %p219 = pneg %p145
      $region30: #{tpu_custom_call.1} parent=11 // pred_check_branch
        %221 = sbr.rel (%p219) target = $region32
      $region31: #{tpu_custom_call.1} parent=11 // pred_region
        _
      $region32: #{tpu_custom_call.1} parent=11 // pred_fallthru
        _
      // Predicated region
      $region33: #{tpu_custom_call.1} parent=11 // pred_check
        %p222 = pneg %p166
      $region34: #{tpu_custom_call.1} parent=11 // pred_check_branch
        %224 = sbr.rel (%p222) target = $region36
      $region35: #{tpu_custom_call.1} parent=11 // pred_region
        _
      $region36: #{tpu_custom_call.1} parent=11 // pred_fallthru
        _
    $region12: #{tpu_custom_call.1} parent=5 // pred_fallthru
      _
    %p225 = scmp.lt.s32.totalorder %s14, 2
    // Predicated region
    $region37: #{tpu_custom_call.1} parent=5 // pred_check
      %p226 = pneg %p225
    $region38: #{tpu_custom_call.1} parent=5 // pred_check_branch
      %228 = sbr.rel (%p226) target = $region40
    $region39: #{tpu_custom_call.1} parent=5 // pred_region
      // Predicated region
      $region41: #{tpu_custom_call.1} parent=39 // pred_check
        %p229 = pneg %p34
      $region42: #{tpu_custom_call.1} parent=39 // pred_check_branch
        %231 = sbr.rel (%p229) target = $region44
      $region43: #{tpu_custom_call.1} parent=39 // pred_region
        %p232 = scmp.lt.s32.totalorder %s14, 1
        %s233 = scalar_select %p232, %s14, 1
        %s234 = smul.addr %s233, 2
        %s235 = smul.addr %s234, 8
        %s236 = scalar_lea.vmem %s0, %s235
      $region44: #{tpu_custom_call.1} parent=39 // pred_fallthru
        _
    $region40: #{tpu_custom_call.1} parent=5 // pred_fallthru
      _
    %p237 = scmp.le.s32.totalorder 1, %s14
    %p238 = scmp.lt.s32.totalorder %s14, 3
    %p239 = pnand %p237, %p238
    %p240 = pneg %p239
    // Predicated region
    $region45: #{tpu_custom_call.1} parent=5 // pred_check
      _
    $region46: #{tpu_custom_call.1} parent=5 // pred_check_branch
      %242 = sbr.rel (%p239) target = $region48
    $region47: #{tpu_custom_call.1} parent=5 // pred_region
      %s243 = ssub.s32 %s14, 1
      %p244 = scmp.lt.s32.totalorder %s19, 1
      %s245 = scalar_select %p244, %s19, 1
      %s246 = smul.addr %s245, 2
      %s247 = smul.addr %s246, 8
      %s248 = scalar_lea.vmem %s0, %s247
      %p249 = pneg %p40
      %p250 = pneg %p37
      %p251 = pneg %p61
      %p252 = pneg %p58
      %p253 = pneg %p82
      %p254 = pneg %p79
      %p255 = pneg %p103
      %p256 = pneg %p100
      %p257 = pneg %p124
      %p258 = pneg %p121
      %p259 = pneg %p145
      %p260 = pneg %p142
      %p261 = pneg %p166
      %p262 = pneg %p163
      %p263 = pneg %p192
      %p264 = pneg %p189
      %p265 = scmp.lt.s32.totalorder %s19, 1
      %s266 = scalar_select %p265, %s19, 1
      %s267 = smul.addr %s266, 2
      %s268 = smul.addr %s267, 8
      %s269 = scalar_lea.vmem %s7, %s268
      %p270 = scmp.lt.s32.totalorder %s19, 1
      %s271 = scalar_select %p270, %s19, 1
      %s272 = smul.addr %s271, 2
      %s273 = smul.addr %s272, 8
      %s274 = scalar_lea.vmem %s0, %s273
      %p275 = scmp.lt.s32.totalorder %s19, 1
      %s276 = scalar_select %p275, %s19, 1
      %s277 = smul.addr %s276, 2
      %s278 = smul.addr %s277, 8
      %s279 = scalar_lea.vmem %s7, %s278
      %v280 = vld [vmem:[%s274] sm:$0xff]
      %v281 = vld [vmem:[%s274 + $0x8] sm:$0xff]
      %v282 = vld [vmem:[%s1] sm:$0xff]
      %v283 = vld [vmem:[%s1 + $0x8] sm:$0xff]
      %v284 = vld [vmem:[%s1 + $0x10] sm:$0xff]
      %v285 = vld [vmem:[%s1 + $0x18] sm:$0xff]
      %v286 = vld [vmem:[%s1 + $0x20] sm:$0xff]
      %v287 = vld [vmem:[%s1 + $0x28] sm:$0xff]
      %v288 = vld [vmem:[%s1 + $0x30] sm:$0xff]
      %v289 = vld [vmem:[%s1 + $0x38] sm:$0xff]
      %v290 = vld [vmem:[%s1 + $0x40] sm:$0xff]
      %v291 = vld [vmem:[%s1 + $0x48] sm:$0xff]
      %v292 = vld [vmem:[%s1 + $0x50] sm:$0xff]
      %v293 = vld [vmem:[%s1 + $0x58] sm:$0xff]
      %v294 = vld [vmem:[%s1 + $0x60] sm:$0xff]
      %v295 = vld [vmem:[%s1 + $0x68] sm:$0xff]
      %v296 = vld [vmem:[%s1 + $0x70] sm:$0xff]
      %v297 = vld [vmem:[%s1 + $0x78] sm:$0xff]
      %v298 = vld [vmem:[%s1 + $0x80] sm:$0xff]
      %v299 = vld [vmem:[%s1 + $0x88] sm:$0xff]
      %v300 = vld [vmem:[%s1 + $0x90] sm:$0xff]
      %v301 = vld [vmem:[%s1 + $0x98] sm:$0xff]
      %v302 = vld [vmem:[%s1 + $0xa0] sm:$0xff]
      %v303 = vld [vmem:[%s1 + $0xa8] sm:$0xff]
      %v304 = vld [vmem:[%s1 + $0xb0] sm:$0xff]
      %v305 = vld [vmem:[%s1 + $0xb8] sm:$0xff]
      %v306 = vld [vmem:[%s1 + $0xc0] sm:$0xff]
      %v307 = vld [vmem:[%s1 + $0xc8] sm:$0xff]
      %v308 = vld [vmem:[%s1 + $0xd0] sm:$0xff]
      %v309 = vld [vmem:[%s1 + $0xd8] sm:$0xff]
      %v310 = vld [vmem:[%s1 + $0xe0] sm:$0xff]
      %v311 = vld [vmem:[%s1 + $0xe8] sm:$0xff]
      %v312 = vld [vmem:[%s1 + $0xf0] sm:$0xff]
      %v313 = vld [vmem:[%s1 + $0xf8] sm:$0xff]
      %v314 = vld [vmem:[%s1 + $0x100] sm:$0xff]
      %v315 = vld [vmem:[%s1 + $0x108] sm:$0xff]
      %v316 = vld [vmem:[%s1 + $0x110] sm:$0xff]
      %v317 = vld [vmem:[%s1 + $0x118] sm:$0xff]
      %v318 = vld [vmem:[%s1 + $0x120] sm:$0xff]
      %v319 = vld [vmem:[%s1 + $0x128] sm:$0xff]
      %v320 = vld [vmem:[%s1 + $0x130] sm:$0xff]
      %v321 = vld [vmem:[%s1 + $0x138] sm:$0xff]
      %v322 = vld [vmem:[%s1 + $0x140] sm:$0xff]
      %v323 = vld [vmem:[%s1 + $0x148] sm:$0xff]
      %v324 = vld [vmem:[%s1 + $0x150] sm:$0xff]
      %v325 = vld [vmem:[%s1 + $0x158] sm:$0xff]
      %v326 = vld [vmem:[%s1 + $0x160] sm:$0xff]
      %v327 = vld [vmem:[%s1 + $0x168] sm:$0xff]
      %v328 = vld [vmem:[%s1 + $0x170] sm:$0xff]
      %v329 = vld [vmem:[%s1 + $0x178] sm:$0xff]
      %v330 = vld [vmem:[%s1 + $0x180] sm:$0xff]
      %v331 = vld [vmem:[%s1 + $0x188] sm:$0xff]
      %v332 = vld [vmem:[%s1 + $0x190] sm:$0xff]
      %v333 = vld [vmem:[%s1 + $0x198] sm:$0xff]
      %v334 = vld [vmem:[%s1 + $0x1a0] sm:$0xff]
      %v335 = vld [vmem:[%s1 + $0x1a8] sm:$0xff]
      %v336 = vld [vmem:[%s1 + $0x1b0] sm:$0xff]
      %v337 = vld [vmem:[%s1 + $0x1b8] sm:$0xff]
      %v338 = vld [vmem:[%s1 + $0x1c0] sm:$0xff]
      %v339 = vld [vmem:[%s1 + $0x1c8] sm:$0xff]
      %v340 = vld [vmem:[%s1 + $0x1d0] sm:$0xff]
      %v341 = vld [vmem:[%s1 + $0x1d8] sm:$0xff]
      %v342 = vld [vmem:[%s1 + $0x1e0] sm:$0xff]
      %v343 = vld [vmem:[%s1 + $0x1e8] sm:$0xff]
      %v344 = vld [vmem:[%s1 + $0x1f0] sm:$0xff]
      %v345 = vld [vmem:[%s1 + $0x1f8] sm:$0xff]
      %v346 = vld [vmem:[%s2] sm:$0xf]
      %v348 = vlaneseq
      %v349 = vshrl.u32 %v348, 7
      %v350 = vsub.s32 0, %v349
      %v351 = vrot.slane %v346, %v350
      %v352 = vlaneseq
      %v353 = vshrl.u32 %v352, 7
      %v354 = vsub.s32 1, %v353
      %v355 = vrot.slane %v346, %v354
      %v356 = vlaneseq
      %v357 = vshrl.u32 %v356, 7
      %v358 = vsub.s32 2, %v357
      %v359 = vrot.slane %v346, %v358
      %v360 = vlaneseq
      %v361 = vshrl.u32 %v360, 7
      %v362 = vsub.s32 3, %v361
      %v363 = vrot.slane %v346, %v362
      %368 = vmatprep.subr.mxu0 %v283
      %369 = vmatpush1.msra.mxu0 %v282
      %370 = vmatprep.subr.mxu0 %v287
      %371 = vmatpush1.msra.mxu0 %v286
      %372 = vmatprep.subr.mxu0 %v291
      %373 = vmatpush1.msra.mxu0 %v290
      %374 = vmatprep.subr.mxu0 %v295
      %375 = vmatpush1.msra.mxu0 %v294
      %376 = vmatprep.subr.mxu0 %v299
      %377 = vmatpush1.msra.mxu0 %v298
      %378 = vmatprep.subr.mxu0 %v303
      %379 = vmatpush1.msra.mxu0 %v302
      %380 = vmatprep.subr.mxu0 %v307
      %381 = vmatpush1.msra.mxu0 %v306
      %382 = vmatprep.subr.mxu0 %v311
      %383 = vmatpush1.msra.mxu0 %v310
      %384 = vmatprep.subr.mxu0 %v315
      %385 = vmatpush1.msra.mxu0 %v314
      %386 = vmatprep.subr.mxu0 %v319
      %387 = vmatpush1.msra.mxu0 %v318
      %388 = vmatprep.subr.mxu0 %v323
      %389 = vmatpush1.msra.mxu0 %v322
      %390 = vmatprep.subr.mxu0 %v327
      %391 = vmatpush1.msra.mxu0 %v326
      %392 = vmatprep.subr.mxu0 %v331
      %393 = vmatpush1.msra.mxu0 %v330
      %394 = vmatprep.subr.mxu0 %v335
      %395 = vmatpush1.msra.mxu0 %v334
      %396 = vmatprep.subr.mxu0 %v339
      %397 = vmatpush1.msra.mxu0 %v338
      %398 = vmatprep.subr.mxu0 %v343
      %399 = vmatpush1.msra.mxu0 %v342
      %400 = vmatprep.subr.mxu0 0.0
      %401 = vmatpush1.msra.mxu0 0.0
      %402 = vmatprep.subr.mxu0 0.0
      %403 = vmatpush1.msra.mxu0 0.0
      %404 = vmatprep.subr.mxu0 0.0
      %405 = vmatpush1.msra.mxu0 0.0
      %406 = vmatprep.subr.mxu0 0.0
      %407 = vmatpush1.msra.mxu0 0.0
      %408 = vmatprep.subr.mxu0 0.0
      %409 = vmatpush1.msra.mxu0 0.0
      %410 = vmatprep.subr.mxu0 0.0
      %411 = vmatpush1.msra.mxu0 0.0
      %412 = vmatprep.subr.mxu0 0.0
      %413 = vmatpush1.msra.mxu0 0.0
      %414 = vmatprep.subr.mxu0 0.0
      %415 = vmatpush1.msra.mxu0 0.0
      %416 = vmatprep.subr.mxu0 0.0
      %417 = vmatpush1.msra.mxu0 0.0
      %418 = vmatprep.subr.mxu0 0.0
      %419 = vmatpush1.msra.mxu0 0.0
      %420 = vmatprep.subr.mxu0 0.0
      %421 = vmatpush1.msra.mxu0 0.0
      %422 = vmatprep.subr.mxu0 0.0
      %423 = vmatpush1.msra.mxu0 0.0
      %424 = vmatprep.subr.mxu0 0.0
      %425 = vmatpush1.msra.mxu0 0.0
      %426 = vmatprep.subr.mxu0 0.0
      %427 = vmatpush1.msra.mxu0 0.0
      %428 = vmatprep.subr.mxu0 0.0
      %429 = vmatpush1.msra.mxu0 0.0
      %430 = vmatprep.subr.mxu0 0.0
      %431 = vmatpush1.msra.mxu0 0.0
      %432 = vmatprep.mubr.f32.mxu0 0.0
      %433 = vmatmul.mubr.f32.gmra.mrb[0].mxu0 %v280
      %v434 = vpop.f32.mrb[0].mxu0
      %v435 = vadd.f32 %v351, %v434
      %v436 = vpop.f32.mrb[0].mxu0
      %v437 = vadd.f32 %v355, %v436
      %438 = vmatprep.mubr.f32.mxu0 0.0
      %439 = vmatmul.mubr.f32.gmra.mrb[0].mxu0 %v281
      %v440 = vpop.f32.mrb[0].mxu0
      %v441 = vadd.f32 %v351, %v440
      %v442 = vpop.f32.mrb[0].mxu0
      %v443 = vadd.f32 %v355, %v442
      %444 = vdwg.mxu0
      %445 = vmatprep.subr.mxu0 %v285
      %446 = vmatpush1.msra.mxu0 %v284
      %447 = vmatprep.subr.mxu0 %v289
      %448 = vmatpush1.msra.mxu0 %v288
      %449 = vmatprep.subr.mxu0 %v293
      %450 = vmatpush1.msra.mxu0 %v292
      %451 = vmatprep.subr.mxu0 %v297
      %452 = vmatpush1.msra.mxu0 %v296
      %453 = vmatprep.subr.mxu0 %v301
      %454 = vmatpush1.msra.mxu0 %v300
      %455 = vmatprep.subr.mxu0 %v305
      %456 = vmatpush1.msra.mxu0 %v304
      %457 = vmatprep.subr.mxu0 %v309
      %458 = vmatpush1.msra.mxu0 %v308
      %459 = vmatprep.subr.mxu0 %v313
      %460 = vmatpush1.msra.mxu0 %v312
      %461 = vmatprep.subr.mxu0 %v317
      %462 = vmatpush1.msra.mxu0 %v316
      %463 = vmatprep.subr.mxu0 %v321
      %464 = vmatpush1.msra.mxu0 %v320
      %465 = vmatprep.subr.mxu0 %v325
      %466 = vmatpush1.msra.mxu0 %v324
      %467 = vmatprep.subr.mxu0 %v329
      %468 = vmatpush1.msra.mxu0 %v328
      %469 = vmatprep.subr.mxu0 %v333
      %470 = vmatpush1.msra.mxu0 %v332
      %471 = vmatprep.subr.mxu0 %v337
      %472 = vmatpush1.msra.mxu0 %v336
      %473 = vmatprep.subr.mxu0 %v341
      %474 = vmatpush1.msra.mxu0 %v340
      %475 = vmatprep.subr.mxu0 %v345
      %476 = vmatpush1.msra.mxu0 %v344
      %477 = vmatprep.subr.mxu0 0.0
      %478 = vmatpush1.msra.mxu0 0.0
      %479 = vmatprep.subr.mxu0 0.0
      %480 = vmatpush1.msra.mxu0 0.0
      %481 = vmatprep.subr.mxu0 0.0
      %482 = vmatpush1.msra.mxu0 0.0
      %483 = vmatprep.subr.mxu0 0.0
      %484 = vmatpush1.msra.mxu0 0.0
      %485 = vmatprep.subr.mxu0 0.0
      %486 = vmatpush1.msra.mxu0 0.0
      %487 = vmatprep.subr.mxu0 0.0
      %488 = vmatpush1.msra.mxu0 0.0
      %489 = vmatprep.subr.mxu0 0.0
      %490 = vmatpush1.msra.mxu0 0.0
      %491 = vmatprep.subr.mxu0 0.0
      %492 = vmatpush1.msra.mxu0 0.0
      %493 = vmatprep.subr.mxu0 0.0
      %494 = vmatpush1.msra.mxu0 0.0
      %495 = vmatprep.subr.mxu0 0.0
      %496 = vmatpush1.msra.mxu0 0.0
      %497 = vmatprep.subr.mxu0 0.0
      %498 = vmatpush1.msra.mxu0 0.0
      %499 = vmatprep.subr.mxu0 0.0
      %500 = vmatpush1.msra.mxu0 0.0
      %501 = vmatprep.subr.mxu0 0.0
      %502 = vmatpush1.msra.mxu0 0.0
      %503 = vmatprep.subr.mxu0 0.0
      %504 = vmatpush1.msra.mxu0 0.0
      %505 = vmatprep.subr.mxu0 0.0
      %506 = vmatpush1.msra.mxu0 0.0
      %507 = vmatprep.subr.mxu0 0.0
      %508 = vmatpush1.msra.mxu0 0.0
      %509 = vmatprep.mubr.f32.mxu0 0.0
      %510 = vmatmul.mubr.f32.gmra.mrb[0].mxu0 %v280
      %v511 = vpop.f32.mrb[0].mxu0
      %v512 = vadd.f32 %v359, %v511
      %v513 = vpop.f32.mrb[0].mxu0
      %v514 = vadd.f32 %v363, %v513
      %515 = vmatprep.mubr.f32.mxu0 0.0
      %516 = vmatmul.mubr.f32.gmra.mrb[0].mxu0 %v281
      %v517 = vpop.f32.mrb[0].mxu0
      %v518 = vadd.f32 %v359, %v517
      %v519 = vpop.f32.mrb[0].mxu0
      %v520 = vadd.f32 %v363, %v519
      %521 = vdwg.mxu0
      %v522 = vmax.f32 %v435, 0.0
      %v523 = vmax.f32 %v437, 0.0
      %v524 = vmax.f32 %v512, 0.0
      %v525 = vmax.f32 %v514, 0.0
      %v526 = vmax.f32 %v441, 0.0
      %v527 = vmax.f32 %v443, 0.0
      %v528 = vmax.f32 %v518, 0.0
      %v529 = vmax.f32 %v520, 0.0
      %v530 = vld [vmem:[%s3] sm:$0xff]
      %v531 = vld [vmem:[%s3 + $0x8] sm:$0xff]
      %v532 = vld [vmem:[%s3 + $0x10] sm:$0xff]
      %v533 = vld [vmem:[%s3 + $0x18] sm:$0xff]
      %v534 = vld [vmem:[%s3 + $0x20] sm:$0xff]
      %v535 = vld [vmem:[%s3 + $0x28] sm:$0xff]
      %v536 = vld [vmem:[%s3 + $0x30] sm:$0xff]
      %v537 = vld [vmem:[%s3 + $0x38] sm:$0xff]
      %v538 = vld [vmem:[%s3 + $0x40] sm:$0xff]
      %v539 = vld [vmem:[%s3 + $0x48] sm:$0xff]
      %v540 = vld [vmem:[%s3 + $0x50] sm:$0xff]
      %v541 = vld [vmem:[%s3 + $0x58] sm:$0xff]
      %v542 = vld [vmem:[%s3 + $0x60] sm:$0xff]
      %v543 = vld [vmem:[%s3 + $0x68] sm:$0xff]
      %v544 = vld [vmem:[%s3 + $0x70] sm:$0xff]
      %v545 = vld [vmem:[%s3 + $0x78] sm:$0xff]
      %v546 = vld [vmem:[%s3 + $0x80] sm:$0xff]
      %v547 = vld [vmem:[%s3 + $0x88] sm:$0xff]
      %v548 = vld [vmem:[%s3 + $0x90] sm:$0xff]
      %v549 = vld [vmem:[%s3 + $0x98] sm:$0xff]
      %v550 = vld [vmem:[%s3 + $0xa0] sm:$0xff]
      %v551 = vld [vmem:[%s3 + $0xa8] sm:$0xff]
      %v552 = vld [vmem:[%s3 + $0xb0] sm:$0xff]
      %v553 = vld [vmem:[%s3 + $0xb8] sm:$0xff]
      %v554 = vld [vmem:[%s3 + $0xc0] sm:$0xff]
      %v555 = vld [vmem:[%s3 + $0xc8] sm:$0xff]
      %v556 = vld [vmem:[%s3 + $0xd0] sm:$0xff]
      %v557 = vld [vmem:[%s3 + $0xd8] sm:$0xff]
      %v558 = vld [vmem:[%s3 + $0xe0] sm:$0xff]
      %v559 = vld [vmem:[%s3 + $0xe8] sm:$0xff]
      %v560 = vld [vmem:[%s3 + $0xf0] sm:$0xff]
      %v561 = vld [vmem:[%s3 + $0xf8] sm:$0xff]
      %v562 = vld [vmem:[%s3 + $0x100] sm:$0xff]
      %v563 = vld [vmem:[%s3 + $0x108] sm:$0xff]
      %v564 = vld [vmem:[%s3 + $0x110] sm:$0xff]
      %v565 = vld [vmem:[%s3 + $0x118] sm:$0xff]
      %v566 = vld [vmem:[%s3 + $0x120] sm:$0xff]
      %v567 = vld [vmem:[%s3 + $0x128] sm:$0xff]
      %v568 = vld [vmem:[%s3 + $0x130] sm:$0xff]
      %v569 = vld [vmem:[%s3 + $0x138] sm:$0xff]
      %v570 = vld [vmem:[%s3 + $0x140] sm:$0xff]
      %v571 = vld [vmem:[%s3 + $0x148] sm:$0xff]
      %v572 = vld [vmem:[%s3 + $0x150] sm:$0xff]
      %v573 = vld [vmem:[%s3 + $0x158] sm:$0xff]
      %v574 = vld [vmem:[%s3 + $0x160] sm:$0xff]
      %v575 = vld [vmem:[%s3 + $0x168] sm:$0xff]
      %v576 = vld [vmem:[%s3 + $0x170] sm:$0xff]
      %v577 = vld [vmem:[%s3 + $0x178] sm:$0xff]
      %v578 = vld [vmem:[%s3 + $0x180] sm:$0xff]
      %v579 = vld [vmem:[%s3 + $0x188] sm:$0xff]
      %v580 = vld [vmem:[%s3 + $0x190] sm:$0xff]
      %v581 = vld [vmem:[%s3 + $0x198] sm:$0xff]
      %v582 = vld [vmem:[%s3 + $0x1a0] sm:$0xff]
      %v583 = vld [vmem:[%s3 + $0x1a8] sm:$0xff]
      %v584 = vld [vmem:[%s3 + $0x1b0] sm:$0xff]
      %v585 = vld [vmem:[%s3 + $0x1b8] sm:$0xff]
      %v586 = vld [vmem:[%s3 + $0x1c0] sm:$0xff]
      %v587 = vld [vmem:[%s3 + $0x1c8] sm:$0xff]
      %v588 = vld [vmem:[%s3 + $0x1d0] sm:$0xff]
      %v589 = vld [vmem:[%s3 + $0x1d8] sm:$0xff]
      %v590 = vld [vmem:[%s3 + $0x1e0] sm:$0xff]
      %v591 = vld [vmem:[%s3 + $0x1e8] sm:$0xff]
      %v592 = vld [vmem:[%s3 + $0x1f0] sm:$0xff]
      %v593 = vld [vmem:[%s3 + $0x1f8] sm:$0xff]
      %v594 = vld [vmem:[%s4] sm:$0x1]
      %v596 = vlaneseq
      %v597 = vshrl.u32 %v596, 7
      %v598 = vsub.s32 0, %v597
      %v599 = vrot.slane %v594, %v598
      %601 = vmatprep.subr.mxu0 0.0
      %602 = vmatpush1.msra.mxu0 %v530
      %603 = vmatprep.subr.mxu0 0.0
      %604 = vmatpush1.msra.mxu0 %v531
      %605 = vmatprep.subr.mxu0 0.0
      %606 = vmatpush1.msra.mxu0 %v532
      %607 = vmatprep.subr.mxu0 0.0
      %608 = vmatpush1.msra.mxu0 %v533
      %609 = vmatprep.subr.mxu0 0.0
      %610 = vmatpush1.msra.mxu0 %v534
      %611 = vmatprep.subr.mxu0 0.0
      %612 = vmatpush1.msra.mxu0 %v535
      %613 = vmatprep.subr.mxu0 0.0
      %614 = vmatpush1.msra.mxu0 %v536
      %615 = vmatprep.subr.mxu0 0.0
      %616 = vmatpush1.msra.mxu0 %v537
      %617 = vmatprep.subr.mxu0 0.0
      %618 = vmatpush1.msra.mxu0 %v538
      %619 = vmatprep.subr.mxu0 0.0
      %620 = vmatpush1.msra.mxu0 %v539
      %621 = vmatprep.subr.mxu0 0.0
      %622 = vmatpush1.msra.mxu0 %v540
      %623 = vmatprep.subr.mxu0 0.0
      %624 = vmatpush1.msra.mxu0 %v541
      %625 = vmatprep.subr.mxu0 0.0
      %626 = vmatpush1.msra.mxu0 %v542
      %627 = vmatprep.subr.mxu0 0.0
      %628 = vmatpush1.msra.mxu0 %v543
      %629 = vmatprep.subr.mxu0 0.0
      %630 = vmatpush1.msra.mxu0 %v544
      %631 = vmatprep.subr.mxu0 0.0
      %632 = vmatpush1.msra.mxu0 %v545
      %633 = vmatprep.subr.mxu0 0.0
      %634 = vmatpush1.msra.mxu0 %v546
      %635 = vmatprep.subr.mxu0 0.0
      %636 = vmatpush1.msra.mxu0 %v547
      %637 = vmatprep.subr.mxu0 0.0
      %638 = vmatpush1.msra.mxu0 %v548
      %639 = vmatprep.subr.mxu0 0.0
      %640 = vmatpush1.msra.mxu0 %v549
      %641 = vmatprep.subr.mxu0 0.0
      %642 = vmatpush1.msra.mxu0 %v550
      %643 = vmatprep.subr.mxu0 0.0
      %644 = vmatpush1.msra.mxu0 %v551
      %645 = vmatprep.subr.mxu0 0.0
      %646 = vmatpush1.msra.mxu0 %v552
      %647 = vmatprep.subr.mxu0 0.0
      %648 = vmatpush1.msra.mxu0 %v553
      %649 = vmatprep.subr.mxu0 0.0
      %650 = vmatpush1.msra.mxu0 %v554
      %651 = vmatprep.subr.mxu0 0.0
      %652 = vmatpush1.msra.mxu0 %v555
      %653 = vmatprep.subr.mxu0 0.0
      %654 = vmatpush1.msra.mxu0 %v556
      %655 = vmatprep.subr.mxu0 0.0
      %656 = vmatpush1.msra.mxu0 %v557
      %657 = vmatprep.subr.mxu0 0.0
      %658 = vmatpush1.msra.mxu0 %v558
      %659 = vmatprep.subr.mxu0 0.0
      %660 = vmatpush1.msra.mxu0 %v559
      %661 = vmatprep.subr.mxu0 0.0
      %662 = vmatpush1.msra.mxu0 %v560
      %663 = vmatprep.subr.mxu0 0.0
      %664 = vmatpush1.msra.mxu0 %v561
      %665 = vmatprep.mubr.f32.mxu0 %v523
      %666 = vmatmul.mubr.f32.gmra.mrb[0].mxu0 %v522
      %v667 = vpop.f32.mrb[0].mxu0
      %v668 = vadd.f32 %v599, %v667
      %v669 = vpop.f32.mrb[0].mxu0
      %670 = vmatprep.mubr.f32.mxu0 %v527
      %671 = vmatmul.mubr.f32.gmra.mrb[0].mxu0 %v526
      %v672 = vpop.f32.mrb[0].mxu0
      %v673 = vadd.f32 %v599, %v672
      %v674 = vpop.f32.mrb[0].mxu0
      %675 = vdwg.mxu0
      %676 = vmatprep.subr.mxu0 0.0
      %677 = vmatpush1.msra.mxu0 %v562
      %678 = vmatprep.subr.mxu0 0.0
      %679 = vmatpush1.msra.mxu0 %v563
      %680 = vmatprep.subr.mxu0 0.0
      %681 = vmatpush1.msra.mxu0 %v564
      %682 = vmatprep.subr.mxu0 0.0
      %683 = vmatpush1.msra.mxu0 %v565
      %684 = vmatprep.subr.mxu0 0.0
      %685 = vmatpush1.msra.mxu0 %v566
      %686 = vmatprep.subr.mxu0 0.0
      %687 = vmatpush1.msra.mxu0 %v567
      %688 = vmatprep.subr.mxu0 0.0
      %689 = vmatpush1.msra.mxu0 %v568
      %690 = vmatprep.subr.mxu0 0.0
      %691 = vmatpush1.msra.mxu0 %v569
      %692 = vmatprep.subr.mxu0 0.0
      %693 = vmatpush1.msra.mxu0 %v570
      %694 = vmatprep.subr.mxu0 0.0
      %695 = vmatpush1.msra.mxu0 %v571
      %696 = vmatprep.subr.mxu0 0.0
      %697 = vmatpush1.msra.mxu0 %v572
      %698 = vmatprep.subr.mxu0 0.0
      %699 = vmatpush1.msra.mxu0 %v573
      %700 = vmatprep.subr.mxu0 0.0
      %701 = vmatpush1.msra.mxu0 %v574
      %702 = vmatprep.subr.mxu0 0.0
      %703 = vmatpush1.msra.mxu0 %v575
      %704 = vmatprep.subr.mxu0 0.0
      %705 = vmatpush1.msra.mxu0 %v576
      %706 = vmatprep.subr.mxu0 0.0
      %707 = vmatpush1.msra.mxu0 %v577
      %708 = vmatprep.subr.mxu0 0.0
      %709 = vmatpush1.msra.mxu0 %v578
      %710 = vmatprep.subr.mxu0 0.0
      %711 = vmatpush1.msra.mxu0 %v579
      %712 = vmatprep.subr.mxu0 0.0
      %713 = vmatpush1.msra.mxu0 %v580
      %714 = vmatprep.subr.mxu0 0.0
      %715 = vmatpush1.msra.mxu0 %v581
      %716 = vmatprep.subr.mxu0 0.0
      %717 = vmatpush1.msra.mxu0 %v582
      %718 = vmatprep.subr.mxu0 0.0
      %719 = vmatpush1.msra.mxu0 %v583
      %720 = vmatprep.subr.mxu0 0.0
      %721 = vmatpush1.msra.mxu0 %v584
      %722 = vmatprep.subr.mxu0 0.0
      %723 = vmatpush1.msra.mxu0 %v585
      %724 = vmatprep.subr.mxu0 0.0
      %725 = vmatpush1.msra.mxu0 %v586
      %726 = vmatprep.subr.mxu0 0.0
      %727 = vmatpush1.msra.mxu0 %v587
      %728 = vmatprep.subr.mxu0 0.0
      %729 = vmatpush1.msra.mxu0 %v588
      %730 = vmatprep.subr.mxu0 0.0
      %731 = vmatpush1.msra.mxu0 %v589
      %732 = vmatprep.subr.mxu0 0.0
      %733 = vmatpush1.msra.mxu0 %v590
      %734 = vmatprep.subr.mxu0 0.0
      %735 = vmatpush1.msra.mxu0 %v591
      %736 = vmatprep.subr.mxu0 0.0
      %737 = vmatpush1.msra.mxu0 %v592
      %738 = vmatprep.subr.mxu0 0.0
      %739 = vmatpush1.msra.mxu0 %v593
      %740 = vmatprep.mubr.f32.mxu0 %v525
      %741 = vmatmul.mubr.f32.gmra.mrb[0].mxu0 %v524
      %v742 = vpop.f32.mrb[0].mxu0
      %v743 = vadd.f32 %v668, %v742
      %v744 = vpop.f32.mrb[0].mxu0
      %745 = vmatprep.mubr.f32.mxu0 %v529
      %746 = vmatmul.mubr.f32.gmra.mrb[0].mxu0 %v528
      %v747 = vpop.f32.mrb[0].mxu0
      %v748 = vadd.f32 %v673, %v747
      %v749 = vpop.f32.mrb[0].mxu0
      %750 = vdwg.mxu0
      %v751 = vmax.f32 %v743, 0.0
      %v752 = vmax.f32 %v748, 0.0
      %v753 = vld [vmem:[%s5] sm:$0x1]
      %v755 = vlaneseq
      %v756 = vshrl.u32 %v755, 7
      %v757 = vsub.s32 0, %v756
      %v758 = vrot.slane %v753, %v757
      %v760 = vmul.f32 %v751, %v758
      %v761 = vmul.f32 %v752, %v758
      %vm762 = vcmask 261120
      %v763 = vsel %vm762, %v760, 0.0
      %764 = vadd.xlane.f32.xlu0 %v763
      %v765 = vpop.xlane.xlu0 %764
      %v766 = vsel %vm762, %v761, 0.0
      %767 = vadd.xlane.f32.xlu0 %v766
      %v768 = vpop.xlane.xlu0 %767
      %s769 = sld [smem:[#allocation2]]
      %v770 = vstv %s769
      %v771 = vadd.f32 %v765, %v770
      %v772 = vadd.f32 %v768, %v770
      %v773 = vxor.u32 %v771, 2147483648
      %v774 = vxor.u32 %v772, 2147483648
      %v775 = vmul.f32 %v773, 1.442695
      %v776 = vpow.pop %v775
      %v777 = vmul.f32 %v774, 1.442695
      %v778 = vpow.pop %v777
      %v779 = vadd.f32 %v776, 1.0
      %v780 = vadd.f32 %v778, 1.0
      %v781 = vrcp.pop %v779
      %v782 = vmul.f32 1.0, %v781
      %v783 = vrcp.pop %v780
      %v784 = vmul.f32 1.0, %v783
      %vm785 = vcmask 7168
      %786 = vst.msk [vmem:[%s279] sm:$0xff] %vm785, %v782
      %787 = vst.msk [vmem:[%s279 + $0x8] sm:$0xff] %vm785, %v784
      %p788 = scmp.lt.s32.totalorder %s19, 1
      %s789 = scalar_select %p788, %s19, 1
      %s790 = smul.addr %s789, 2
      %s791 = smul.addr %s790, 8
      %s792 = scalar_lea.vmem %s7, %s791
      // Predicated region
      $region49: #{tpu_custom_call.1} parent=47 // pred_check
        %p793 = pneg %p189
      $region50: #{tpu_custom_call.1} parent=47 // pred_check_branch
        %795 = sbr.rel (%p793) target = $region52
      $region51: #{tpu_custom_call.1} parent=47 // pred_region
        _
      $region52: #{tpu_custom_call.1} parent=47 // pred_fallthru
        _
    $region48: #{tpu_custom_call.1} parent=5 // pred_fallthru
      _
    %p796 = scmp.le.s32.totalorder 2, %s14
    // Predicated region
    $region53: #{tpu_custom_call.1} parent=5 // pred_check
      %p797 = pneg %p796
    $region54: #{tpu_custom_call.1} parent=5 // pred_check_branch
      %799 = sbr.rel (%p797) target = $region56
    $region55: #{tpu_custom_call.1} parent=5 // pred_region
      %s800 = ssub.s32 %s14, 2
      // Predicated region
      $region57: #{tpu_custom_call.1} parent=55 // pred_check
        %p801 = pneg %p195
      $region58: #{tpu_custom_call.1} parent=55 // pred_check_branch
        %803 = sbr.rel (%p801) target = $region60
      $region59: #{tpu_custom_call.1} parent=55 // pred_region
        %p804 = scmp.lt.s32.totalorder %s20, 1
        %s805 = scalar_select %p804, %s20, 1
        %s806 = smul.addr %s805, 2
        %s807 = smul.addr %s806, 8
        %s808 = scalar_lea.vmem %s7, %s807
      $region60: #{tpu_custom_call.1} parent=55 // pred_fallthru
        _
    $region56: #{tpu_custom_call.1} parent=5 // pred_fallthru
      _
  $region6: #{tpu_custom_call.1} parent=0 // loop_footer
    %s18 = sadd.s32 1, %s14
  $region7: #{tpu_custom_call.1} parent=0 // loop_footer_branch
    %13 = sbr.rel target = $region3
  $region8: #{tpu_custom_call.1} parent=0 // loop_exit
    _

</llo_original>
